<compile_context>
chip_gen: v5e
topology: v5e:2x2
jax: 0.10.0
libtpu: 0.0.40
codegen_flags: <defaults>
</compile_context>

<pallas_src>
import functools

import jax
import jax.numpy as jnp
from jax.experimental import pallas as pl
from jax.experimental.pallas import tpu as pltpu


def _round_up(a, b):
    return (a + b - 1) // b * b


def _near_inorm_kernel(x_ref, p_ref, o_ref, *, eps, near_momentum):
    # x_ref: (rows, HW)
    # p_ref: (rows, 4) = [running_mean, running_var, weight, bias] per row
    x = x_ref[...].astype(jnp.float32)
    p = p_ref[...].astype(jnp.float32)
    rm = p[:, 0:1]
    rv = p[:, 1:2]
    w = p[:, 2:3]
    b = p[:, 3:4]

    hw = x.shape[-1]

    # One-pass statistics: sum and sum-of-squares -> mean / unbiased variance.
    # Avoids a second full-width pass over x and a live (rows, HW) temporary.
    # NOTE: one-pass variance can cancel catastrophically when |mean| >> std;
    # acceptable in f32 for typical (roughly normalized) activations.
    s1 = jnp.sum(x, axis=-1, keepdims=True)
    s2 = jnp.sum(x * x, axis=-1, keepdims=True)
    inst_mean = s1 * jnp.float32(1.0 / hw)
    # torch .var() default is unbiased (divide by N-1).  For HW == 1 torch
    # would give NaN; we guard with a denominator of 1 (var = 0) instead.
    inv_denom = jnp.float32(1.0 / max(hw - 1, 1))
    inst_var = jnp.maximum(s2 - s1 * inst_mean, 0.0) * inv_denom
    inst_std = jnp.sqrt(inst_var + jnp.float32(eps))

    alpha = jnp.float32(1.0 - near_momentum)
    near_mean = inst_mean + alpha * rm
    near_std = inst_std + alpha * rv

    # Fold normalize + affine into per-row scale/shift: the wide path is just
    # one mul + one add per element.  The reciprocal acts on the narrow
    # (rows, 1) vector only; exact form keeps us tight with the reference
    # (approx=True would route it to the EUP at ~1e-4 relative error).
    inv_std = pl.reciprocal(near_std, approx=False)
    scale = w * inv_std
    shift = b - near_mean * scale
    o_ref[...] = (x * scale + shift).astype(o_ref.dtype)


def near_instance_norm_2d(x, running_mean, running_var, weight, bias,
                          *, eps=1e-5, near_momentum=0.5):
    """x: (B, C, H, W) float array.  Returns array of same shape/dtype."""
    B, C, H, W = x.shape
    BC, HW = B * C, H * W
    x2d = x.reshape(BC, HW)

    # Pack the per-row (b, c) parameters (repeated over batch, matching
    # .repeat(b)) into a single (BC, 4) f32 array: one small DMA per grid
    # step instead of four separate (rows, 1) tiles.
    params = jnp.stack(
        [jnp.tile(running_mean.astype(jnp.float32), B),
         jnp.tile(running_var.astype(jnp.float32), B),
         jnp.tile(weight.astype(jnp.float32), B),
         jnp.tile(bias.astype(jnp.float32), B)],
        axis=-1)                                            # (BC, 4)

    # ---- Row-block sizing ------------------------------------------------
    # Memory-bound kernel: each grid step should move a couple of MiB so the
    # ~0.35 us per-step overhead is amortized (tiles of ~1-4 MiB reach the
    # HBM roofline), while total VMEM use (double-buffered in/out + f32
    # intermediates, roughly 6x the block) stays well inside every
    # generation's VMEM — including v7x's 64 MiB.
    itemsize = jnp.dtype(x.dtype).itemsize
    target_block_bytes = 2 * 1024 * 1024
    rows_fit = max(1, target_block_bytes // max(1, HW * max(itemsize, 4)))
    BC8 = _round_up(BC, 8)
    row_block = max(8, (rows_fit // 8) * 8)
    row_block = min(row_block, BC8)
    # Prefer >= 2 grid steps when there is enough work so both v7x
    # TensorCores get a share of the (parallel) row axis.
    if BC8 // row_block < 2 and row_block >= 16:
        row_block = max(8, (row_block // 2 // 8) * 8)

    grid_rows = pl.cdiv(BC8, row_block)
    BC_pad = grid_rows * row_block

    if BC_pad != BC:
        # Zero padding is safe: padded rows get inst_std = sqrt(eps) > 0 and
        # weight = 0, so no inf/nan appears; the rows are sliced off after.
        x2d = jnp.pad(x2d, ((0, BC_pad - BC), (0, 0)))
        params = jnp.pad(params, ((0, BC_pad - BC), (0, 0)))

    kernel = functools.partial(_near_inorm_kernel,
                               eps=eps, near_momentum=near_momentum)

    # 32 MiB scoped VMEM: above v5e's 16 MiB default, equal to the v6e/v7x
    # defaults, and only half of v7x's 64 MiB physical VMEM.
    vmem_limit = 32 * 1024 * 1024

    out2d = pl.pallas_call(
        kernel,
        out_shape=jax.ShapeDtypeStruct((BC_pad, HW), x.dtype),
        grid_spec=pltpu.PrefetchScalarGridSpec(
            num_scalar_prefetch=0,
            grid=(grid_rows,),
            in_specs=[
                pl.BlockSpec((row_block, HW), lambda i: (i, 0)),
                pl.BlockSpec((row_block, 4), lambda i: (i, 0)),
            ],
            out_specs=pl.BlockSpec((row_block, HW), lambda i: (i, 0)),
        ),
        compiler_params=pltpu.CompilerParams(
            dimension_semantics=("parallel",),
            vmem_limit_bytes=vmem_limit),
    )(x2d, params)

    if BC_pad != BC:
        out2d = out2d[:BC]
    return out2d.reshape(B, C, H, W)


def _reference(x, running_mean, running_var, weight, bias,
               eps=1e-5, near_momentum=0.5):
    B, C, H, W = x.shape
    x2d = x.reshape(B * C, -1).astype(jnp.float32)
    inst_mean = x2d.mean(-1)
    inst_var = x2d.var(-1, ddof=1)
    inst_std = jnp.sqrt(inst_var + eps)
    near_mean = inst_mean + (1 - near_momentum) * jnp.tile(running_mean, B)
    near_std = inst_std + (1 - near_momentum) * jnp.tile(running_var, B)
    out = (x2d - near_mean[:, None]) / near_std[:, None]
    out = out * jnp.tile(weight, B)[:, None] + jnp.tile(bias, B)[:, None]
    return out.reshape(B, C, H, W).astype(x.dtype)


if __name__ == "__main__":
    B, C, H, W = 2, 4, 16, 16
    key = jax.random.PRNGKey(0)
    kx, kw = jax.random.split(key)

    x = jax.random.normal(kx, (B, C, H, W), dtype=jnp.float32)

    # Deterministic parameter init mirroring reset_parameters():
    running_mean = jnp.zeros((C,), jnp.float32)
    running_var = jnp.ones((C,), jnp.float32)
    weight = jax.random.uniform(kw, (C,), jnp.float32, 0.95, 1.05)
    bias = jnp.zeros((C,), jnp.float32)

    out = near_instance_norm_2d(x, running_mean, running_var, weight, bias,
                                eps=1e-5, near_momentum=0.5)
    out = jax.block_until_ready(out)

    ref = _reference(x, running_mean, running_var, weight, bias)
    assert out.shape == x.shape and out.dtype == x.dtype
    # One-pass (kernel) vs two-pass (reference) variance differ by f32
    # rounding only; 1e-4 tolerance validates the semantics.
    assert jnp.allclose(out, ref, atol=1e-4, rtol=1e-4)

    print("KERNEL_OK")
</pallas_src>

<mosaic_0001>
module attributes {stable_mosaic.version = 11 : i64} {
  func.func @_near_inorm_kernel(%arg0: i32, %arg1: memref<8x256xf32, #tpu.memory_space<vmem>>, %arg2: memref<8x4xf32, #tpu.memory_space<vmem>>, %arg3: memref<8x256xf32, #tpu.memory_space<vmem>>) attributes {dimension_semantics = [#tpu.dimension_semantics<parallel>], iteration_bounds = array<i64: 1>, scalar_prefetch = 0 : i64, scratch_operands = 0 : i64, tpu.core_type = #tpu.core_type<tc>, window_params = [{transform_indices = @transform_0, window_bounds = array<i64: 8, 256>}, {transform_indices = @transform_1, window_bounds = array<i64: 8, 4>}, {transform_indices = @transform_2, window_bounds = array<i64: 8, 256>}]} {
    %c0 = arith.constant 0 : index
    %c0_0 = arith.constant 0 : index
    %0 = vector.load %arg1[%c0, %c0_0] : memref<8x256xf32, #tpu.memory_space<vmem>>, vector<8x256xf32>
    %c0_1 = arith.constant 0 : index
    %c0_2 = arith.constant 0 : index
    %1 = vector.load %arg2[%c0_1, %c0_2] : memref<8x4xf32, #tpu.memory_space<vmem>>, vector<8x4xf32>
    %2 = vector.extract_strided_slice %1 {offsets = [0, 0], sizes = [8, 1], strides = [1, 1]} : vector<8x4xf32> to vector<8x1xf32>
    %3 = vector.extract_strided_slice %1 {offsets = [0, 1], sizes = [8, 1], strides = [1, 1]} : vector<8x4xf32> to vector<8x1xf32>
    %4 = vector.extract_strided_slice %1 {offsets = [0, 2], sizes = [8, 1], strides = [1, 1]} : vector<8x4xf32> to vector<8x1xf32>
    %5 = vector.extract_strided_slice %1 {offsets = [0, 3], sizes = [8, 1], strides = [1, 1]} : vector<8x4xf32> to vector<8x1xf32>
    %cst = arith.constant dense<0.000000e+00> : vector<8xf32>
    %6 = vector.multi_reduction <add>, %0, %cst [1] : vector<8x256xf32> to vector<8xf32>
    %7 = vector.shape_cast %6 : vector<8xf32> to vector<8x1xf32>
    %8 = arith.mulf %0, %0 : vector<8x256xf32>
    %cst_3 = arith.constant dense<0.000000e+00> : vector<8xf32>
    %9 = vector.multi_reduction <add>, %8, %cst_3 [1] : vector<8x256xf32> to vector<8xf32>
    %10 = vector.shape_cast %9 : vector<8xf32> to vector<8x1xf32>
    %cst_4 = arith.constant 3.906250e-03 : f32
    %11 = vector.broadcast %cst_4 : f32 to vector<8x1xf32>
    %12 = arith.mulf %7, %11 : vector<8x1xf32>
    %13 = arith.mulf %7, %12 : vector<8x1xf32>
    %14 = arith.subf %10, %13 : vector<8x1xf32>
    %cst_5 = arith.constant 0.000000e+00 : f32
    %15 = vector.broadcast %cst_5 : f32 to vector<8x1xf32>
    %16 = arith.maximumf %14, %15 : vector<8x1xf32>
    %cst_6 = arith.constant 0.00392156886 : f32
    %17 = vector.broadcast %cst_6 : f32 to vector<8x1xf32>
    %18 = arith.mulf %16, %17 : vector<8x1xf32>
    %cst_7 = arith.constant 9.99999974E-6 : f32
    %19 = vector.broadcast %cst_7 : f32 to vector<8x1xf32>
    %20 = arith.addf %18, %19 : vector<8x1xf32>
    %21 = math.sqrt %20 : vector<8x1xf32>
    %cst_8 = arith.constant 5.000000e-01 : f32
    %22 = vector.broadcast %cst_8 : f32 to vector<8x1xf32>
    %23 = arith.mulf %22, %2 : vector<8x1xf32>
    %24 = arith.addf %12, %23 : vector<8x1xf32>
    %cst_9 = arith.constant 5.000000e-01 : f32
    %25 = vector.broadcast %cst_9 : f32 to vector<8x1xf32>
    %26 = arith.mulf %25, %3 : vector<8x1xf32>
    %27 = arith.addf %21, %26 : vector<8x1xf32>
    %28 = tpu.reciprocal %27 : vector<8x1xf32> -> vector<8x1xf32>
    %29 = arith.mulf %4, %28 : vector<8x1xf32>
    %30 = arith.mulf %24, %29 : vector<8x1xf32>
    %31 = arith.subf %5, %30 : vector<8x1xf32>
    %32 = vector.broadcast %29 : vector<8x1xf32> to vector<8x256xf32>
    %33 = arith.mulf %0, %32 : vector<8x256xf32>
    %34 = vector.broadcast %31 : vector<8x1xf32> to vector<8x256xf32>
    %35 = arith.addf %33, %34 : vector<8x256xf32>
    %c0_10 = arith.constant 0 : index
    %c0_11 = arith.constant 0 : index
    %36 = vector.load %arg3[%c0_10, %c0_11] : memref<8x256xf32, #tpu.memory_space<vmem>>, vector<8x256xf32>
    tpu.vector_store %arg3[%c0_10, %c0_11], %35 {strides = array<i32>} : memref<8x256xf32, #tpu.memory_space<vmem>>, vector<8x256xf32>,
    return
  }
  func.func @transform_0(%arg0: i32) -> (i32, i32) {
    %c0_i32 = arith.constant 0 : i32
    %c0_i32_0 = arith.constant 0 : i32
    return %arg0, %c0_i32 : i32, i32
  }
  func.func @transform_1(%arg0: i32) -> (i32, i32) {
    %c0_i32 = arith.constant 0 : i32
    %c0_i32_0 = arith.constant 0 : i32
    return %arg0, %c0_i32 : i32, i32
  }
  func.func @transform_2(%arg0: i32) -> (i32, i32) {
    %c0_i32 = arith.constant 0 : i32
    %c0_i32_0 = arith.constant 0 : i32
    return %arg0, %c0_i32 : i32, i32
  }
}

</mosaic_0001>

<llo_original>
// kernel: tpu_custom_call.1
$region0: #{tpu_custom_call.1}
  #allocation0 [shape = 'u32[]', space=smem, size = 0x4, offset = 0x4, fixed_abs, tag = 'smem constant byte address 0x4 - core index']
  #allocation1 [shape = 'u32[72,128]{1,0:T(1,128)}', space=vmem, size = 0x9000, scoped, tag = 'internal scratch']
  %s0 = inlined_call_operand.hbm [shape: f32[8,256], index: 0, kind: input, shape index: {}]
  %s1 = inlined_call_operand.vmem [shape: f32[8,4], index: 1, kind: input, shape index: {}]
  %s2 = inlined_call_operand.hbm [shape: f32[8,256], index: 2, kind: output, shape index: {}]
  %s3 = sld [smem:[#allocation0]]
  $region22: #{tpu_custom_call.1} parent=0
    _
  %s5 = ssub.s32 1, %s3
  %s6 = scalar_select 0, %s5, %s3
  $region1: #{tpu_custom_call.1} parent=0
    #allocation2 [shape = 'u8[8192]{0}', space=vmem, size = 0x2000, scoped, tag = 'input window, operand 0, single buffered']
    #allocation3 [shape = 's32[1]{0}', space=sflag, size = 0x4, scoped, tag = 'scoped memory for tpu_custom_call.1']
    #allocation4 [shape = 's32[1]{0}', space=sflag, size = 0x4, scoped, tag = 'scoped memory for tpu_custom_call.1']
    #allocation5 [shape = 'u8[8192]{0}', space=vmem, size = 0x2000, scoped, tag = 'output window, operand 0, single buffered']
    %7 = vsyncpa [#allocation3], 0
    %8 = vsyncpa [#allocation4], 0
    // Predicated region
    $region2: #{tpu_custom_call.1} parent=1 // pred_check
      _
    $region3: #{tpu_custom_call.1} parent=1 // pred_check_branch
      %10 = sbr.rel (0) target = $region5
    $region4: #{tpu_custom_call.1} parent=1 // pred_region
      %12 = vsyncadd [#allocation3], 0
      %s14 = sshll.u32 %s0, 4
      %s15 = int_to_ptr.hbm [resolvable:$true] %s14
      %s16 = sshll.u32 [#allocation2], 4
      %s17 = int_to_ptr.vmem [resolvable:$true] %s16
      %19 = dma.hbm_to_vmem [thread:$0]  %s15, 256, %s17, [#allocation3]
    $region5: #{tpu_custom_call.1} parent=1 // pred_fallthru
      _
    // Predicated region
    $region6: #{tpu_custom_call.1} parent=1 // pred_check
      _
    $region7: #{tpu_custom_call.1} parent=1 // pred_check_branch
      %21 = sbr.rel (0) target = $region9
    $region8: #{tpu_custom_call.1} parent=1 // pred_region
      _
    $region9: #{tpu_custom_call.1} parent=1 // pred_fallthru
      _
    // Predicated region
    $region10: #{tpu_custom_call.1} parent=1 // pred_check
      _
    $region11: #{tpu_custom_call.1} parent=1 // pred_check_branch
      %23 = sbr.rel (0) target = $region13
    $region12: #{tpu_custom_call.1} parent=1 // pred_region
      %25 = dma.done [#allocation3], 256
    $region13: #{tpu_custom_call.1} parent=1 // pred_fallthru
      _
    %v26 = vld [vmem:[#allocation2] sm:$0xff]
    %v27 = vld [vmem:[#allocation2 + $0x8] sm:$0xff]
    %v28 = vld [vmem:[%s1] sm:$0xff]
    %v29 = vadd.f32 %v26, %v27
    %30 = vadd.xlane.f32.xlu0 %v29
    %v31 = vpop.xlane.xlu0 %30
    %v32 = vmul.f32 %v26, %v26
    %v33 = vmul.f32 %v27, %v27
    %v34 = vadd.f32 %v32, %v33
    %35 = vadd.xlane.f32.xlu0 %v34
    %v36 = vpop.xlane.xlu0 %35
    %v37 = vmul.f32 %v31, 0.00390625
    %v38 = vmul.f32 %v31, %v37
    %v39 = vsub.f32 %v36, %v38
    %v40 = vmax.f32 %v39, 0.0
    %v41 = vmul.f32 %v40, 0.003921569
    %v42 = vadd.f32 %v41, 1e-05
    %v43 = vrsqrt.pop %v42
    %v44 = vmul.f32 %v43, %v42
    %v45 = vmul.f32 %v44, %v43
    %v46 = vmul.f32 0.5, %v45
    %v47 = vsub.f32 1.5, %v46
    %v48 = vmul.f32 %v43, %v47
    %v49 = vmul.f32 %v42, %v48
    %vm50 = vcmp.eq.f32.partialorder %v42, inf
    %v51 = vsel %vm50, %v42, %v49
    %vm52 = vcmp.eq.f32.partialorder %v42, 0.0
    %v53 = vand.u32 %v42, 2147483648
    %v54 = vsel %vm52, %v53, %v51
    %v55 = vmul.f32 %v28, 0.5
    %v56 = vadd.f32 %v37, %v55
    %v57 = vadd.f32 %v54, %v55
    %v58 = vrcp.pop %v57
    %v59 = vmul.f32 %v57, %v58
    %v60 = vsub.f32 1.0, %v59
    %v61 = vmul.f32 %v58, %v60
    %v62 = vadd.f32 %v58, %v61
    %vm63 = vweird.f32 %v57
    %vm64 = vweird.f32 %v58
    %vm65 = vmor %vm63, %vm64
    %v66 = vsel %vm65, %v58, %v62
    %v67 = vand.u32 2147483647, %v57
    %vm68 = vcmp.eq.f32.partialorder %v67, 8.507059e+37
    %v69 = vand.u32 %v57, 2147483648
    %v70 = vor.u32 1.1754944e-38, %v69
    %v71 = vsel %vm68, %v70, %v66
    %73 = vrot.lane.b32.xlu0 %v71, 1
    %v74 = vpop.permute.xlu0 %73
    %v76 = vmul.f32 %v28, %v74
    %78 = vrot.lane.b32.xlu0 %v76, 126
    %v79 = vpop.permute.xlu0 %78
    %v81 = vmul.f32 %v56, %v79
    %83 = vrot.lane.b32.xlu0 %v81, 3
    %v84 = vpop.permute.xlu0 %83
    %v86 = vsub.f32 %v28, %v84
    %87 = vset.pattern.permute.xlu0 2
    %88 = vperm.xlu0 %87, %v76
    %v89 = vpop.permute.xlu0 %88
    %v91 = vmul.f32 %v26, %v89
    %v92 = vmul.f32 %v27, %v89
    %94 = vset.pattern.permute.xlu0 3
    %95 = vperm.xlu0 %94, %v86
    %v96 = vpop.permute.xlu0 %95
    %v98 = vadd.f32 %v91, %v96
    %v99 = vadd.f32 %v92, %v96
    %100 = vst [vmem:[#allocation5] sm:$0xff] %v98
    %101 = vst [vmem:[#allocation5 + $0x8] sm:$0xff] %v99
    // Predicated region
    $region14: #{tpu_custom_call.1} parent=1 // pred_check
      _
    $region15: #{tpu_custom_call.1} parent=1 // pred_check_branch
      %103 = sbr.rel (0) target = $region17
    $region16: #{tpu_custom_call.1} parent=1 // pred_region
      %105 = vsyncadd [#allocation4], 0
      %s107 = sshll.u32 [#allocation5], 4
      %s108 = int_to_ptr.vmem [resolvable:$true] %s107
      %s109 = sshll.u32 %s2, 4
      %s110 = int_to_ptr.hbm [resolvable:$true] %s109
      %112 = dma.vmem_to_hbm [thread:$0]  %s108, 256, %s110, [#allocation4]
    $region17: #{tpu_custom_call.1} parent=1 // pred_fallthru
      _
    // Predicated region
    $region18: #{tpu_custom_call.1} parent=1 // pred_check
      _
    $region19: #{tpu_custom_call.1} parent=1 // pred_check_branch
      %114 = sbr.rel (0) target = $region21
    $region20: #{tpu_custom_call.1} parent=1 // pred_region
      %116 = dma.done [#allocation4], 256
    $region21: #{tpu_custom_call.1} parent=1 // pred_fallthru
      _
    %117 = vsyncpa [#allocation3], 1
    %118 = vsyncpa [#allocation4], 1

</llo_original>
